<compile_context>
chip_gen: v5e
topology: v5e:2x2
jax: 0.10.0
libtpu: 0.0.40
codegen_flags: <defaults>
</compile_context>

<pallas_src>
import math

import jax
import jax.numpy as jnp
from jax.experimental import pallas as pl
from jax.experimental.pallas import tpu as pltpu


def _mish_kernel(x_ref, o_ref):
    # x_ref / o_ref block shape: (ROW_TILE, LANE), lane-dense.
    x = x_ref[...].astype(jnp.float32)
    # tanh(softplus(x)) == (e^2 + 2e) / (e^2 + 2e + 2) with e = exp(x).
    e = jnp.exp(jnp.minimum(x, 20.0))
    num = e * (e + 2.0)
    out = x * (num / (num + 2.0))
    o_ref[...] = out.astype(o_ref.dtype)


def mish_v2(x, *, lane_tile=512, max_row_tile=1024):
    """Elementwise Mish forward: x * tanh(softplus(x)). Any input shape."""
    shape = x.shape
    dtype = x.dtype
    total = math.prod(shape) if shape else 1

    # Lane-dense 2-D layout: (rows, lane_tile); rows tiled in multiples of 8.
    nrows = pl.cdiv(total, lane_tile)
    row_tile = min(max_row_tile, ((nrows + 7) // 8) * 8)
    nrows_pad = pl.cdiv(nrows, row_tile) * row_tile
    padded_total = nrows_pad * lane_tile

    flat = x.reshape(-1)
    if padded_total != total:
        # Elementwise op: zero padding is harmless and discarded afterwards.
        flat = jnp.pad(flat, (0, padded_total - total))
    x2 = flat.reshape(nrows_pad, lane_tile)

    grid = (nrows_pad // row_tile,)
    bytes_per_elem = jnp.dtype(dtype).itemsize
    out = pl.pallas_call(
        _mish_kernel,
        out_shape=jax.ShapeDtypeStruct((nrows_pad, lane_tile), dtype),
        grid_spec=pltpu.PrefetchScalarGridSpec(
            num_scalar_prefetch=0,
            grid=grid,
            in_specs=[pl.BlockSpec((row_tile, lane_tile), lambda i: (i, 0))],
            out_specs=pl.BlockSpec((row_tile, lane_tile), lambda i: (i, 0)),
        ),
        compiler_params=pltpu.CompilerParams(
            dimension_semantics=("parallel",),
        ),
        cost_estimate=pl.CostEstimate(
            flops=6 * padded_total,
            transcendentals=2 * padded_total,
            bytes_accessed=2 * padded_total * bytes_per_elem,
        ),
    )(x2)

    if padded_total != total:
        return out.reshape(-1)[:total].reshape(shape)
    return out.reshape(shape)


def _reference(x):
    xf = x.astype(jnp.float32)
    return (xf * jnp.tanh(jax.nn.softplus(xf))).astype(x.dtype)


# TODO(synk): MishFunctionV2's custom backward (cached grad) is not
# implemented; only the forward pass is provided here.

if __name__ == "__main__":
    key = jax.random.PRNGKey(0)
    x = jax.random.normal(key, (2, 4, 16, 16), dtype=jnp.float32) * 3.0

    out = mish_v2(x)
    out = jax.block_until_ready(out)

    ref = _reference(x)
    assert out.shape == x.shape
    assert jnp.allclose(out, ref, atol=1e-5, rtol=1e-5), float(
        jnp.max(jnp.abs(out - ref)))

    print("KERNEL_OK")
</pallas_src>

<mosaic_0001>
module attributes {stable_mosaic.version = 11 : i64} {
  func.func @_mish_kernel(%arg0: i32, %arg1: memref<8x512xf32, #tpu.memory_space<vmem>>, %arg2: memref<8x512xf32, #tpu.memory_space<vmem>>) attributes {dimension_semantics = [#tpu.dimension_semantics<parallel>], iteration_bounds = array<i64: 1>, scalar_prefetch = 0 : i64, scratch_operands = 0 : i64, tpu.core_type = #tpu.core_type<tc>, window_params = [{transform_indices = @transform_0, window_bounds = array<i64: 8, 512>}, {transform_indices = @transform_1, window_bounds = array<i64: 8, 512>}]} {
    %c0 = arith.constant 0 : index
    %c0_0 = arith.constant 0 : index
    %0 = vector.load %arg1[%c0, %c0_0] : memref<8x512xf32, #tpu.memory_space<vmem>>, vector<8x512xf32>
    %cst = arith.constant 2.000000e+01 : f32
    %1 = vector.broadcast %cst : f32 to vector<8x512xf32>
    %2 = arith.minimumf %0, %1 : vector<8x512xf32>
    %3 = math.exp %2 : vector<8x512xf32>
    %cst_1 = arith.constant 2.000000e+00 : f32
    %4 = vector.broadcast %cst_1 : f32 to vector<8x512xf32>
    %5 = arith.addf %3, %4 : vector<8x512xf32>
    %6 = arith.mulf %3, %5 : vector<8x512xf32>
    %cst_2 = arith.constant 2.000000e+00 : f32
    %7 = vector.broadcast %cst_2 : f32 to vector<8x512xf32>
    %8 = arith.addf %6, %7 : vector<8x512xf32>
    %9 = arith.divf %6, %8 : vector<8x512xf32>
    %10 = arith.mulf %0, %9 : vector<8x512xf32>
    %c0_3 = arith.constant 0 : index
    %c0_4 = arith.constant 0 : index
    %11 = vector.load %arg2[%c0_3, %c0_4] : memref<8x512xf32, #tpu.memory_space<vmem>>, vector<8x512xf32>
    tpu.vector_store %arg2[%c0_3, %c0_4], %10 {strides = array<i32>} : memref<8x512xf32, #tpu.memory_space<vmem>>, vector<8x512xf32>,
    return
  }
  func.func @transform_0(%arg0: i32) -> (i32, i32) {
    %c0_i32 = arith.constant 0 : i32
    %c0_i32_0 = arith.constant 0 : i32
    return %arg0, %c0_i32 : i32, i32
  }
  func.func @transform_1(%arg0: i32) -> (i32, i32) {
    %c0_i32 = arith.constant 0 : i32
    %c0_i32_0 = arith.constant 0 : i32
    return %arg0, %c0_i32 : i32, i32
  }
}

</mosaic_0001>

<llo_original>
// kernel: tpu_custom_call.1
$region0: #{tpu_custom_call.1}
  #allocation0 [shape = 'u32[]', space=smem, size = 0x4, offset = 0x4, fixed_abs, tag = 'smem constant byte address 0x4 - core index']
  #allocation1 [shape = 'u32[72,128]{1,0:T(1,128)}', space=vmem, size = 0x9000, scoped, tag = 'internal scratch']
  %s0 = inlined_call_operand.hbm [shape: f32[8,512], index: 0, kind: input, shape index: {}]
  %s1 = inlined_call_operand.hbm [shape: f32[8,512], index: 1, kind: output, shape index: {}]
  %s2 = sld [smem:[#allocation0]]
  $region18: #{tpu_custom_call.1} parent=0
    _
  %s4 = ssub.s32 1, %s2
  %s5 = scalar_select 0, %s4, %s2
  $region1: #{tpu_custom_call.1} parent=0
    #allocation2 [shape = 'u8[16384]{0}', space=vmem, size = 0x4000, scoped, tag = 'input window, operand 0, single buffered']
    #allocation3 [shape = 's32[1]{0}', space=sflag, size = 0x4, scoped, tag = 'scoped memory for tpu_custom_call.1']
    #allocation4 [shape = 's32[1]{0}', space=sflag, size = 0x4, scoped, tag = 'scoped memory for tpu_custom_call.1']
    #allocation5 [shape = 'u8[16384]{0}', space=vmem, size = 0x4000, scoped, tag = 'output window, operand 0, single buffered']
    %6 = vsyncpa [#allocation3], 0
    %7 = vsyncpa [#allocation4], 0
    // Predicated region
    $region2: #{tpu_custom_call.1} parent=1 // pred_check
      _
    $region3: #{tpu_custom_call.1} parent=1 // pred_check_branch
      %9 = sbr.rel (0) target = $region5
    $region4: #{tpu_custom_call.1} parent=1 // pred_region
      %11 = vsyncadd [#allocation3], 0
      %s13 = sshll.u32 %s0, 4
      %s14 = int_to_ptr.hbm [resolvable:$true] %s13
      %s15 = sshll.u32 [#allocation2], 4
      %s16 = int_to_ptr.vmem [resolvable:$true] %s15
      %18 = dma.hbm_to_vmem [thread:$0]  %s14, 512, %s16, [#allocation3]
    $region5: #{tpu_custom_call.1} parent=1 // pred_fallthru
      _
    // Predicated region
    $region6: #{tpu_custom_call.1} parent=1 // pred_check
      _
    $region7: #{tpu_custom_call.1} parent=1 // pred_check_branch
      %20 = sbr.rel (0) target = $region9
    $region8: #{tpu_custom_call.1} parent=1 // pred_region
      %22 = dma.done [#allocation3], 512
    $region9: #{tpu_custom_call.1} parent=1 // pred_fallthru
      _
    %v23 = vld [vmem:[#allocation2] sm:$0xff]
    %v24 = vld [vmem:[#allocation2 + $0x8] sm:$0xff]
    %v25 = vld [vmem:[#allocation2 + $0x10] sm:$0xff]
    %v26 = vld [vmem:[#allocation2 + $0x18] sm:$0xff]
    %v27 = vmin.f32 %v23, 20.0
    %v28 = vmin.f32 %v24, 20.0
    %v29 = vmin.f32 %v25, 20.0
    %v30 = vmin.f32 %v26, 20.0
    %v31 = vmul.f32 %v27, 1.442695
    %v32 = vpow.pop %v31
    %v33 = vmul.f32 %v28, 1.442695
    %v34 = vpow.pop %v33
    %v35 = vmul.f32 %v29, 1.442695
    %v36 = vpow.pop %v35
    %v37 = vmul.f32 %v30, 1.442695
    %v38 = vpow.pop %v37
    %v39 = vadd.f32 %v32, 2.0
    %v40 = vadd.f32 %v34, 2.0
    %v41 = vadd.f32 %v36, 2.0
    %v42 = vadd.f32 %v38, 2.0
    %v43 = vmul.f32 %v32, %v39
    %v44 = vmul.f32 %v34, %v40
    %v45 = vmul.f32 %v36, %v41
    %v46 = vmul.f32 %v38, %v42
    %v47 = vadd.f32 %v43, 2.0
    %v48 = vadd.f32 %v44, 2.0
    %v49 = vadd.f32 %v45, 2.0
    %v50 = vadd.f32 %v46, 2.0
    %v51 = vrcp.pop %v47
    %v52 = vmul.f32 %v47, %v51
    %v53 = vsub.f32 1.0, %v52
    %v54 = vmul.f32 %v51, %v53
    %v55 = vadd.f32 %v51, %v54
    %vm56 = vweird.f32 %v47
    %vm57 = vweird.f32 %v51
    %vm58 = vmor %vm56, %vm57
    %v59 = vsel %vm58, %v51, %v55
    %v60 = vand.u32 2147483647, %v47
    %vm61 = vcmp.eq.f32.partialorder %v60, 8.507059e+37
    %v62 = vand.u32 %v47, 2147483648
    %v63 = vor.u32 1.1754944e-38, %v62
    %v64 = vsel %vm61, %v63, %v59
    %v65 = vmul.f32 %v43, %v64
    %v66 = vrcp.pop %v48
    %v67 = vmul.f32 %v48, %v66
    %v68 = vsub.f32 1.0, %v67
    %v69 = vmul.f32 %v66, %v68
    %v70 = vadd.f32 %v66, %v69
    %vm71 = vweird.f32 %v48
    %vm72 = vweird.f32 %v66
    %vm73 = vmor %vm71, %vm72
    %v74 = vsel %vm73, %v66, %v70
    %v75 = vand.u32 2147483647, %v48
    %vm76 = vcmp.eq.f32.partialorder %v75, 8.507059e+37
    %v77 = vand.u32 %v48, 2147483648
    %v78 = vor.u32 1.1754944e-38, %v77
    %v79 = vsel %vm76, %v78, %v74
    %v80 = vmul.f32 %v44, %v79
    %v81 = vrcp.pop %v49
    %v82 = vmul.f32 %v49, %v81
    %v83 = vsub.f32 1.0, %v82
    %v84 = vmul.f32 %v81, %v83
    %v85 = vadd.f32 %v81, %v84
    %vm86 = vweird.f32 %v49
    %vm87 = vweird.f32 %v81
    %vm88 = vmor %vm86, %vm87
    %v89 = vsel %vm88, %v81, %v85
    %v90 = vand.u32 2147483647, %v49
    %vm91 = vcmp.eq.f32.partialorder %v90, 8.507059e+37
    %v92 = vand.u32 %v49, 2147483648
    %v93 = vor.u32 1.1754944e-38, %v92
    %v94 = vsel %vm91, %v93, %v89
    %v95 = vmul.f32 %v45, %v94
    %v96 = vrcp.pop %v50
    %v97 = vmul.f32 %v50, %v96
    %v98 = vsub.f32 1.0, %v97
    %v99 = vmul.f32 %v96, %v98
    %v100 = vadd.f32 %v96, %v99
    %vm101 = vweird.f32 %v50
    %vm102 = vweird.f32 %v96
    %vm103 = vmor %vm101, %vm102
    %v104 = vsel %vm103, %v96, %v100
    %v105 = vand.u32 2147483647, %v50
    %vm106 = vcmp.eq.f32.partialorder %v105, 8.507059e+37
    %v107 = vand.u32 %v50, 2147483648
    %v108 = vor.u32 1.1754944e-38, %v107
    %v109 = vsel %vm106, %v108, %v104
    %v110 = vmul.f32 %v46, %v109
    %v111 = vmul.f32 %v23, %v65
    %v112 = vmul.f32 %v24, %v80
    %v113 = vmul.f32 %v25, %v95
    %v114 = vmul.f32 %v26, %v110
    %115 = vst [vmem:[#allocation5] sm:$0xff] %v111
    %116 = vst [vmem:[#allocation5 + $0x8] sm:$0xff] %v112
    %117 = vst [vmem:[#allocation5 + $0x10] sm:$0xff] %v113
    %118 = vst [vmem:[#allocation5 + $0x18] sm:$0xff] %v114
    // Predicated region
    $region10: #{tpu_custom_call.1} parent=1 // pred_check
      _
    $region11: #{tpu_custom_call.1} parent=1 // pred_check_branch
      %120 = sbr.rel (0) target = $region13
    $region12: #{tpu_custom_call.1} parent=1 // pred_region
      %122 = vsyncadd [#allocation4], 0
      %s124 = sshll.u32 [#allocation5], 4
      %s125 = int_to_ptr.vmem [resolvable:$true] %s124
      %s126 = sshll.u32 %s1, 4
      %s127 = int_to_ptr.hbm [resolvable:$true] %s126
      %129 = dma.vmem_to_hbm [thread:$0]  %s125, 512, %s127, [#allocation4]
    $region13: #{tpu_custom_call.1} parent=1 // pred_fallthru
      _
    // Predicated region
    $region14: #{tpu_custom_call.1} parent=1 // pred_check
      _
    $region15: #{tpu_custom_call.1} parent=1 // pred_check_branch
      %131 = sbr.rel (0) target = $region17
    $region16: #{tpu_custom_call.1} parent=1 // pred_region
      %133 = dma.done [#allocation4], 512
    $region17: #{tpu_custom_call.1} parent=1 // pred_fallthru
      _
    %134 = vsyncpa [#allocation3], 1
    %135 = vsyncpa [#allocation4], 1

</llo_original>
